<compile_context>
chip_gen: v5e
topology: v5e:2x2
jax: 0.10.0
libtpu: 0.0.40
codegen_flags: <defaults>
</compile_context>

<pallas_src>
import functools

import jax
import jax.numpy as jnp
from jax.experimental import pallas as pl
from jax.experimental.pallas import tpu as pltpu

_MiB = 1024 * 1024


def _distill_kl_kernel(ys_ref, yt_ref, out_ref, acc_ref, *,
                       inv_t, scale, n_rows, tile_n, needs_mask):
    tile = pl.program_id(0)

    @pl.when(tile == 0)
    def _init():
        acc_ref[...] = jnp.zeros_like(acc_ref)

    # Multiply by 1/T (VPU fmul) instead of dividing by T; cast to f32 here
    # so low-precision logits travel over HBM in their native width.
    ys = ys_ref[...].astype(jnp.float32) * inv_t
    yt = yt_ref[...].astype(jnp.float32) * inv_t

    # Student log-softmax over the class axis.
    ys_shift = ys - jnp.max(ys, axis=-1, keepdims=True)
    log_zs = jnp.log(jnp.sum(jnp.exp(ys_shift), axis=-1, keepdims=True))
    log_p_s = ys_shift - log_zs

    # Teacher softmax + log-softmax, one exp pass.  Exact divide: the
    # reciprocal is per-row (negligible next to 2*tile_n*C exps), so the
    # approx variant only cost accuracy.
    yt_shift = yt - jnp.max(yt, axis=-1, keepdims=True)
    e_t = jnp.exp(yt_shift)
    z_t = jnp.sum(e_t, axis=-1, keepdims=True)
    log_p_t = yt_shift - jnp.log(z_t)
    p_t = e_t / z_t

    kl_elem = p_t * (log_p_t - log_p_s)

    if needs_mask:
        # Ragged last tile: garbage rows may carry NaN/Inf through the
        # softmaxes, but they stay confined to their row and are zeroed here.
        rows = tile * tile_n + jax.lax.broadcasted_iota(
            jnp.int32, (tile_n, 1), 0)
        kl_elem = jnp.where(rows < n_rows, kl_elem, 0.0)

    # Fold rows into an (8, C) sublane-partial with plain VPU adds; the
    # single cross-lane/sublane reduce is deferred to the finalize step.
    part = jnp.sum(kl_elem.reshape(tile_n // 8, 8, -1), axis=0)
    acc_ref[...] = acc_ref[...] + part

    @pl.when(tile == pl.num_programs(0) - 1)
    def _finalize():
        total = jnp.sum(acc_ref[...]) * scale          # T^2 / N folded in once
        out_ref[...] = jnp.full(out_ref.shape, total, dtype=out_ref.dtype)


def _round_up(x, m):
    return ((x + m - 1) // m) * m


def distill_kl(y_s, y_t, temperature, *, tile_rows=None):
    """Pallas implementation of DistillKL.forward; returns a scalar f32."""
    assert y_s.shape == y_t.shape and y_s.ndim == 2
    n, c = y_s.shape
    itemsize = jnp.dtype(y_s.dtype).itemsize
    sublane = {4: 8, 2: 16, 1: 32}.get(itemsize, 8)

    # ---- chip-aware scoped-VMEM limit -----------------------------------
    try:
        vmem_phys = int(pltpu.get_tpu_info().vmem_capacity_bytes)
    except Exception:
        vmem_phys = 64 * _MiB                     # conservative (v7x per-TC)
    if vmem_phys >= 96 * _MiB:                    # v5e / v6e: 128 MiB physical
        vmem_limit = 64 * _MiB
    else:                                         # v7x: 64 MiB per TensorCore
        vmem_limit = 40 * _MiB
    vmem_budget = vmem_limit - 8 * _MiB           # headroom

    # ---- batch-tile selection -------------------------------------------
    # Per-row VMEM: 2 inputs x 2 pipeline buffers in the input dtype plus
    # ~5 live full-tile f32 temporaries (~20 B/elem) from the f32 compute.
    bytes_per_row = c * (4 * itemsize + 20)
    max_tile_rows = max(sublane, vmem_budget // bytes_per_row)

    n_pad = _round_up(n, sublane)
    if tile_rows is not None:
        tile_n = _round_up(max(int(tile_rows), sublane), sublane)
    else:
        tile_n = max(sublane,
                     (min(max_tile_rows, 8192) // sublane) * sublane)
    tile_n = min(tile_n, n_pad)

    num_tiles = pl.cdiv(n, tile_n)
    needs_mask = (num_tiles * tile_n != n)

    inv_t = 1.0 / float(temperature)
    scale = float(temperature) ** 2 / float(n)    # T^2 / N, applied once

    kernel = functools.partial(
        _distill_kl_kernel,
        inv_t=inv_t, scale=scale, n_rows=n, tile_n=tile_n,
        needs_mask=needs_mask)

    cost = pl.CostEstimate(
        flops=12 * n * c,
        transcendentals=2 * n * c + 3 * n,
        bytes_accessed=2 * n * c * itemsize + 8 * 128 * 4)

    # NOTE: for tiny class counts (e.g. C=10/100) the last dim runs at low
    # lane utilization; acceptable here since the kernel is HBM-bound, but a
    # wrapper-side pad of C to 128 would help on compute-bound chips.
    out = pl.pallas_call(
        kernel,
        out_shape=jax.ShapeDtypeStruct((8, 128), jnp.float32),
        grid_spec=pltpu.PrefetchScalarGridSpec(
            num_scalar_prefetch=0,
            grid=(num_tiles,),
            in_specs=[
                pl.BlockSpec((tile_n, c), lambda i: (i, 0)),
                pl.BlockSpec((tile_n, c), lambda i: (i, 0)),
            ],
            out_specs=pl.BlockSpec((8, 128), lambda i: (0, 0)),
            scratch_shapes=[pltpu.VMEM((8, c), jnp.float32)],
        ),
        compiler_params=pltpu.CompilerParams(
            dimension_semantics=("arbitrary",),
            vmem_limit_bytes=vmem_limit,
        ),
        cost_estimate=cost,
    )(y_s, y_t)

    return out[0, 0]


def distill_kl_ref(y_s, y_t, temperature):
    """Pure-JAX reference mirroring the PyTorch semantics."""
    log_p_s = jax.nn.log_softmax(y_s / temperature, axis=1)
    log_p_t = jax.nn.log_softmax(y_t / temperature, axis=1)
    p_t = jnp.exp(log_p_t)
    kl = jnp.sum(p_t * (log_p_t - log_p_s))
    return kl * temperature**2 / y_s.shape[0]


if __name__ == "__main__":
    T = 4.0
    key = jax.random.PRNGKey(0)
    k1, k2, k3, k4, k5, k6, k7, k8 = jax.random.split(key, 8)

    # Exact reciprocal now -> tight tolerances (only f32 rounding remains).
    RTOL, ATOL = 1e-4, 1e-6

    # 1) Small f32 case: single full-extent tile.
    y_s = jax.random.normal(k1, (8, 128), dtype=jnp.float32)
    y_t = jax.random.normal(k2, (8, 128), dtype=jnp.float32)
    loss = jax.block_until_ready(distill_kl(y_s, y_t, T))
    ref = distill_kl_ref(y_s, y_t, T)
    assert jnp.allclose(loss, ref, rtol=RTOL, atol=ATOL), (loss, ref)

    # 2) Ragged batch + forced small tile: multi-tile accumulation + masking
    #    of the garbage rows in the ragged last tile.
    y_s = jax.random.normal(k3, (20, 256), dtype=jnp.float32)
    y_t = jax.random.normal(k4, (20, 256), dtype=jnp.float32)
    loss = jax.block_until_ready(distill_kl(y_s, y_t, T, tile_rows=8))
    ref = distill_kl_ref(y_s, y_t, T)
    assert jnp.allclose(loss, ref, rtol=RTOL, atol=ATOL), (loss, ref)

    # 3) bf16 logits pass through untouched (cast to f32 inside the kernel).
    y_s = jax.random.normal(k5, (32, 256), dtype=jnp.bfloat16)
    y_t = jax.random.normal(k6, (32, 256), dtype=jnp.bfloat16)
    loss = jax.block_until_ready(distill_kl(y_s, y_t, T, tile_rows=16))
    ref = distill_kl_ref(y_s.astype(jnp.float32), y_t.astype(jnp.float32), T)
    assert jnp.allclose(loss, ref, rtol=RTOL, atol=ATOL), (loss, ref)

    # 4) CIFAR-style class count (C=100, not a multiple of 128), default
    #    auto-sized tile path.
    y_s = jax.random.normal(k7, (200, 100), dtype=jnp.float32)
    y_t = jax.random.normal(k8, (200, 100), dtype=jnp.float32)
    loss = jax.block_until_ready(distill_kl(y_s, y_t, T))
    ref = distill_kl_ref(y_s, y_t, T)
    assert jnp.allclose(loss, ref, rtol=RTOL, atol=ATOL), (loss, ref)

    print("KERNEL_OK")
</pallas_src>

<mosaic_0001>
module attributes {stable_mosaic.version = 11 : i64} {
  func.func @_distill_kl_kernel(%arg0: i32, %arg1: memref<8x128xf32, #tpu.memory_space<vmem>>, %arg2: memref<8x128xf32, #tpu.memory_space<vmem>>, %arg3: memref<8x128xf32, #tpu.memory_space<vmem>>, %arg4: memref<8x128xf32, #tpu.memory_space<vmem>>) attributes {dimension_semantics = [#tpu.dimension_semantics<arbitrary>], iteration_bounds = array<i64: 1>, scalar_prefetch = 0 : i64, scratch_operands = 1 : i64, tpu.core_type = #tpu.core_type<tc>, window_params = [{transform_indices = @transform_0, window_bounds = array<i64: 8, 128>}, {transform_indices = @transform_1, window_bounds = array<i64: 8, 128>}, {pipeline_mode = #tpu.pipeline_mode<synchronous>, transform_indices = @transform_2, window_bounds = array<i64: 8, 128>}]} {
    %c0_i32 = arith.constant 0 : i32
    %0 = arith.cmpi eq, %arg0, %c0_i32 : i32
    %1 = arith.extui %0 : i1 to i32
    %c0_i32_0 = arith.constant 0 : i32
    %2 = arith.cmpi ne, %1, %c0_i32_0 : i32
    scf.if %2 {
      %cst_16 = arith.constant 0.000000e+00 : f32
      %41 = vector.broadcast %cst_16 : f32 to vector<8x128xf32>
      %c0_17 = arith.constant 0 : index
      %c0_18 = arith.constant 0 : index
      %42 = vector.load %arg4[%c0_17, %c0_18] : memref<8x128xf32, #tpu.memory_space<vmem>>, vector<8x128xf32>
      tpu.vector_store %arg4[%c0_17, %c0_18], %41 {strides = array<i32>} : memref<8x128xf32, #tpu.memory_space<vmem>>, vector<8x128xf32>,
    } else {
    }
    %c0 = arith.constant 0 : index
    %c0_1 = arith.constant 0 : index
    %3 = vector.load %arg1[%c0, %c0_1] : memref<8x128xf32, #tpu.memory_space<vmem>>, vector<8x128xf32>
    %cst = arith.constant 2.500000e-01 : f32
    %4 = vector.broadcast %cst : f32 to vector<8x128xf32>
    %5 = arith.mulf %3, %4 : vector<8x128xf32>
    %c0_2 = arith.constant 0 : index
    %c0_3 = arith.constant 0 : index
    %6 = vector.load %arg2[%c0_2, %c0_3] : memref<8x128xf32, #tpu.memory_space<vmem>>, vector<8x128xf32>
    %cst_4 = arith.constant 2.500000e-01 : f32
    %7 = vector.broadcast %cst_4 : f32 to vector<8x128xf32>
    %8 = arith.mulf %6, %7 : vector<8x128xf32>
    %cst_5 = arith.constant dense<0xFF800000> : vector<8xf32>
    %9 = vector.multi_reduction <maximumf>, %5, %cst_5 [1] : vector<8x128xf32> to vector<8xf32>
    %10 = vector.shape_cast %9 : vector<8xf32> to vector<8x1xf32>
    %11 = vector.broadcast %10 : vector<8x1xf32> to vector<8x128xf32>
    %12 = arith.subf %5, %11 : vector<8x128xf32>
    %13 = math.exp %12 : vector<8x128xf32>
    %cst_6 = arith.constant dense<0.000000e+00> : vector<8xf32>
    %14 = vector.multi_reduction <add>, %13, %cst_6 [1] : vector<8x128xf32> to vector<8xf32>
    %15 = vector.shape_cast %14 : vector<8xf32> to vector<8x1xf32>
    %16 = math.log %15 : vector<8x1xf32>
    %17 = vector.broadcast %16 : vector<8x1xf32> to vector<8x128xf32>
    %18 = arith.subf %12, %17 : vector<8x128xf32>
    %cst_7 = arith.constant dense<0xFF800000> : vector<8xf32>
    %19 = vector.multi_reduction <maximumf>, %8, %cst_7 [1] : vector<8x128xf32> to vector<8xf32>
    %20 = vector.shape_cast %19 : vector<8xf32> to vector<8x1xf32>
    %21 = vector.broadcast %20 : vector<8x1xf32> to vector<8x128xf32>
    %22 = arith.subf %8, %21 : vector<8x128xf32>
    %23 = math.exp %22 : vector<8x128xf32>
    %cst_8 = arith.constant dense<0.000000e+00> : vector<8xf32>
    %24 = vector.multi_reduction <add>, %23, %cst_8 [1] : vector<8x128xf32> to vector<8xf32>
    %25 = vector.shape_cast %24 : vector<8xf32> to vector<8x1xf32>
    %26 = math.log %25 : vector<8x1xf32>
    %27 = vector.broadcast %26 : vector<8x1xf32> to vector<8x128xf32>
    %28 = arith.subf %22, %27 : vector<8x128xf32>
    %29 = vector.broadcast %25 : vector<8x1xf32> to vector<8x128xf32>
    %30 = arith.divf %23, %29 : vector<8x128xf32>
    %31 = arith.subf %28, %18 : vector<8x128xf32>
    %32 = arith.mulf %30, %31 : vector<8x128xf32>
    %33 = vector.shape_cast %32 : vector<8x128xf32> to vector<1x8x128xf32>
    %cst_9 = arith.constant dense<0.000000e+00> : vector<8x128xf32>
    %34 = vector.multi_reduction <add>, %33, %cst_9 [0] : vector<1x8x128xf32> to vector<8x128xf32>
    %c0_10 = arith.constant 0 : index
    %c0_11 = arith.constant 0 : index
    %35 = vector.load %arg4[%c0_10, %c0_11] : memref<8x128xf32, #tpu.memory_space<vmem>>, vector<8x128xf32>
    %36 = arith.addf %35, %34 : vector<8x128xf32>
    %c0_12 = arith.constant 0 : index
    %c0_13 = arith.constant 0 : index
    %37 = vector.load %arg4[%c0_12, %c0_13] : memref<8x128xf32, #tpu.memory_space<vmem>>, vector<8x128xf32>
    tpu.vector_store %arg4[%c0_12, %c0_13], %36 {strides = array<i32>} : memref<8x128xf32, #tpu.memory_space<vmem>>, vector<8x128xf32>,
    %c0_i32_14 = arith.constant 0 : i32
    %38 = arith.cmpi eq, %arg0, %c0_i32_14 : i32
    %39 = arith.extui %38 : i1 to i32
    %c0_i32_15 = arith.constant 0 : i32
    %40 = arith.cmpi ne, %39, %c0_i32_15 : i32
    scf.if %40 {
      %c0_16 = arith.constant 0 : index
      %c0_17 = arith.constant 0 : index
      %41 = vector.load %arg4[%c0_16, %c0_17] : memref<8x128xf32, #tpu.memory_space<vmem>>, vector<8x128xf32>
      %42 = vector.shape_cast %41 : vector<8x128xf32> to vector<1x8x128xf32>
      %cst_18 = arith.constant dense<0.000000e+00> : vector<1xf32>
      %43 = vector.multi_reduction <add>, %42, %cst_18 [1, 2] : vector<1x8x128xf32> to vector<1xf32>
      %44 = vector.shape_cast %43 : vector<1xf32> to vector<1x1x1xf32>
      %45 = vector.extract %44[0, 0, 0] : f32 from vector<1x1x1xf32>
      %cst_19 = arith.constant 2.000000e+00 : f32
      %46 = arith.mulf %45, %cst_19 : f32
      %47 = vector.broadcast %46 : f32 to vector<8x128xf32>
      %c0_20 = arith.constant 0 : index
      %c0_21 = arith.constant 0 : index
      %48 = vector.load %arg3[%c0_20, %c0_21] : memref<8x128xf32, #tpu.memory_space<vmem>>, vector<8x128xf32>
      tpu.vector_store %arg3[%c0_20, %c0_21], %47 {strides = array<i32>} : memref<8x128xf32, #tpu.memory_space<vmem>>, vector<8x128xf32>,
    } else {
    }
    return
  }
  func.func @transform_0(%arg0: i32) -> (i32, i32) {
    %c0_i32 = arith.constant 0 : i32
    %c0_i32_0 = arith.constant 0 : i32
    return %arg0, %c0_i32 : i32, i32
  }
  func.func @transform_1(%arg0: i32) -> (i32, i32) {
    %c0_i32 = arith.constant 0 : i32
    %c0_i32_0 = arith.constant 0 : i32
    return %arg0, %c0_i32 : i32, i32
  }
  func.func @transform_2(%arg0: i32) -> (i32, i32) {
    %c0_i32 = arith.constant 0 : i32
    %c0_i32_0 = arith.constant 0 : i32
    %c0_i32_1 = arith.constant 0 : i32
    return %c0_i32, %c0_i32_0 : i32, i32
  }
}

</mosaic_0001>

<llo_original>
// kernel: tpu_custom_call.1
$region0: #{tpu_custom_call.1}
  #allocation0 [shape = 'u32[]', space=smem, size = 0x4, offset = 0x4, fixed_abs, tag = 'smem constant byte address 0x4 - core index']
  #allocation1 [shape = 'u32[72,128]{1,0:T(1,128)}', space=vmem, size = 0x9000, scoped, tag = 'internal scratch']
  #allocation2 [shape = 'f32[8,128]{1,0:T(8,128)}', space=vmem, size = 0x1000, scoped, tag = 'scratch operand']
  %s0 = inlined_call_operand.hbm [shape: f32[8,128], index: 0, kind: input, shape index: {}]
  %s1 = inlined_call_operand.hbm [shape: f32[8,128], index: 1, kind: input, shape index: {}]
  %s2 = inlined_call_operand.hbm [shape: f32[8,128], index: 2, kind: output, shape index: {}]
  %s3 = sld [smem:[#allocation0]]
  $region34: #{tpu_custom_call.1} parent=0
    _
  %s5 = ssub.s32 1, %s3
  %s6 = scalar_select 0, %s5, %s3
  $region1: #{tpu_custom_call.1} parent=0
    #allocation3 [shape = 'u8[4096]{0}', space=vmem, size = 0x1000, scoped, tag = 'input window, operand 0, single buffered']
    #allocation4 [shape = 's32[1]{0}', space=sflag, size = 0x4, scoped, tag = 'scoped memory for tpu_custom_call.1']
    #allocation5 [shape = 's32[1]{0}', space=sflag, size = 0x4, scoped, tag = 'scoped memory for tpu_custom_call.1']
    #allocation6 [shape = 'u8[4096]{0}', space=vmem, size = 0x1000, scoped, tag = 'input window, operand 1, single buffered']
    #allocation7 [shape = 's32[1]{0}', space=sflag, size = 0x4, scoped, tag = 'scoped memory for tpu_custom_call.1']
    #allocation8 [shape = 'u8[4096]{0}', space=vmem, size = 0x1000, scoped, tag = 'output window, operand 0, single buffered']
    %7 = vsyncpa [#allocation4], 0
    %8 = vsyncpa [#allocation7], 0
    %9 = vsyncpa [#allocation5], 0
    // Predicated region
    $region2: #{tpu_custom_call.1} parent=1 // pred_check
      _
    $region3: #{tpu_custom_call.1} parent=1 // pred_check_branch
      %11 = sbr.rel (0) target = $region5
    $region4: #{tpu_custom_call.1} parent=1 // pred_region
      %13 = vsyncadd [#allocation4], 0
      %s15 = sshll.u32 %s0, 4
      %s16 = int_to_ptr.hbm [resolvable:$true] %s15
      %s17 = sshll.u32 [#allocation3], 4
      %s18 = int_to_ptr.vmem [resolvable:$true] %s17
      %20 = dma.hbm_to_vmem [thread:$0]  %s16, 128, %s18, [#allocation4]
    $region5: #{tpu_custom_call.1} parent=1 // pred_fallthru
      _
    // Predicated region
    $region6: #{tpu_custom_call.1} parent=1 // pred_check
      _
    $region7: #{tpu_custom_call.1} parent=1 // pred_check_branch
      %22 = sbr.rel (0) target = $region9
    $region8: #{tpu_custom_call.1} parent=1 // pred_region
      %24 = vsyncadd [#allocation7], 0
      %s26 = sshll.u32 %s1, 4
      %s27 = int_to_ptr.hbm [resolvable:$true] %s26
      %s28 = sshll.u32 [#allocation6], 4
      %s29 = int_to_ptr.vmem [resolvable:$true] %s28
      %31 = dma.hbm_to_vmem [thread:$0]  %s27, 128, %s29, [#allocation7]
    $region9: #{tpu_custom_call.1} parent=1 // pred_fallthru
      _
    // Predicated region
    $region10: #{tpu_custom_call.1} parent=1 // pred_check
      _
    $region11: #{tpu_custom_call.1} parent=1 // pred_check_branch
      %33 = sbr.rel (0) target = $region13
    $region12: #{tpu_custom_call.1} parent=1 // pred_region
      %35 = dma.done [#allocation4], 128
    $region13: #{tpu_custom_call.1} parent=1 // pred_fallthru
      _
    // Predicated region
    $region14: #{tpu_custom_call.1} parent=1 // pred_check
      _
    $region15: #{tpu_custom_call.1} parent=1 // pred_check_branch
      %37 = sbr.rel (0) target = $region17
    $region16: #{tpu_custom_call.1} parent=1 // pred_region
      %39 = dma.done [#allocation7], 128
    $region17: #{tpu_custom_call.1} parent=1 // pred_fallthru
      _
    %p40 = scmp.eq.s32.totalorder 0, 0
    // Predicated region
    $region18: #{tpu_custom_call.1} parent=1 // pred_check
      %p41 = pneg %p40
    $region19: #{tpu_custom_call.1} parent=1 // pred_check_branch
      %43 = sbr.rel (%p41) target = $region21
    $region20: #{tpu_custom_call.1} parent=1 // pred_region
      %44 = vst [vmem:[#allocation2] sm:$0xff] 0.0
    $region21: #{tpu_custom_call.1} parent=1 // pred_fallthru
      _
    %v45 = vld [vmem:[#allocation3] sm:$0xff]
    %v46 = vmul.f32 %v45, 0.25
    %v47 = vld [vmem:[#allocation6] sm:$0xff]
    %v48 = vmul.f32 %v47, 0.25
    %49 = vmax.xlane.f32.xlu0 %v46
    %v50 = vpop.xlane.xlu0 %49
    %v51 = vsub.f32 %v46, %v50
    %v52 = vmul.f32 %v51, 1.442695
    %v53 = vpow.pop %v52
    %54 = vadd.xlane.f32.xlu0 %v53
    %v55 = vpop.xlane.xlu0 %54
    %v56 = vlog2.pop %v55
    %v57 = vmul.f32 %v56, 0.6931472
    %v58 = vsub.f32 %v51, %v57
    %59 = vmax.xlane.f32.xlu0 %v48
    %v60 = vpop.xlane.xlu0 %59
    %v61 = vsub.f32 %v48, %v60
    %v62 = vmul.f32 %v61, 1.442695
    %v63 = vpow.pop %v62
    %64 = vadd.xlane.f32.xlu0 %v63
    %v65 = vpop.xlane.xlu0 %64
    %v66 = vlog2.pop %v65
    %v67 = vmul.f32 %v66, 0.6931472
    %v68 = vsub.f32 %v61, %v67
    %v69 = vrcp.pop %v65
    %v70 = vmul.f32 %v65, %v69
    %v71 = vsub.f32 1.0, %v70
    %v72 = vmul.f32 %v69, %v71
    %v73 = vadd.f32 %v69, %v72
    %vm74 = vweird.f32 %v65
    %vm75 = vweird.f32 %v69
    %vm76 = vmor %vm74, %vm75
    %v77 = vsel %vm76, %v69, %v73
    %v78 = vand.u32 2147483647, %v65
    %vm79 = vcmp.eq.f32.partialorder %v78, 8.507059e+37
    %v80 = vand.u32 %v65, 2147483648
    %v81 = vor.u32 1.1754944e-38, %v80
    %v82 = vsel %vm79, %v81, %v77
    %v83 = vmul.f32 %v63, %v82
    %v84 = vsub.f32 %v68, %v58
    %v85 = vmul.f32 %v83, %v84
    %v86 = vadd.f32 %v85, 0.0
    %v87 = vld [vmem:[#allocation2] sm:$0xff]
    %v88 = vadd.f32 %v87, %v86
    %89 = vst [vmem:[#allocation2] sm:$0xff] %v88
    // Predicated region
    $region22: #{tpu_custom_call.1} parent=1 // pred_check
      %p90 = pneg %p40
    $region23: #{tpu_custom_call.1} parent=1 // pred_check_branch
      %92 = sbr.rel (%p90) target = $region25
    $region24: #{tpu_custom_call.1} parent=1 // pred_region
      %v93 = vld [vmem:[#allocation2] sm:$0xff]
      %94 = vadd.xlane.f32.xlu0 %v93
      %v95 = vpop.xlane.xlu0 %94
      %v96 = vrot.slane %v95, 4
      %v97 = vadd.f32 %v95, %v96
      %v98 = vrot.slane %v97, 2
      %v99 = vadd.f32 %v97, %v98
      %v100 = vrot.slane %v99, 1
      %v101 = vadd.f32 %v99, %v100
      %s102 = vtos %v101
      %s103 = smul.f32 %s102, 2.0
      %v104 = vstv %s103
      %105 = vst [vmem:[#allocation8] sm:$0xff] %v104
    $region25: #{tpu_custom_call.1} parent=1 // pred_fallthru
      _
    // Predicated region
    $region26: #{tpu_custom_call.1} parent=1 // pred_check
      _
    $region27: #{tpu_custom_call.1} parent=1 // pred_check_branch
      %107 = sbr.rel (0) target = $region29
    $region28: #{tpu_custom_call.1} parent=1 // pred_region
      %109 = vsyncadd [#allocation5], 0
      %s111 = sshll.u32 [#allocation8], 4
      %s112 = int_to_ptr.vmem [resolvable:$true] %s111
      %s113 = sshll.u32 %s2, 4
      %s114 = int_to_ptr.hbm [resolvable:$true] %s113
      %116 = dma.vmem_to_hbm [thread:$0]  %s112, 128, %s114, [#allocation5]
    $region29: #{tpu_custom_call.1} parent=1 // pred_fallthru
      _
    // Predicated region
    $region30: #{tpu_custom_call.1} parent=1 // pred_check
      _
    $region31: #{tpu_custom_call.1} parent=1 // pred_check_branch
      %118 = sbr.rel (0) target = $region33
    $region32: #{tpu_custom_call.1} parent=1 // pred_region
      %120 = dma.done [#allocation5], 128
    $region33: #{tpu_custom_call.1} parent=1 // pred_fallthru
      _
    %121 = vsyncpa [#allocation4], 1
    %122 = vsyncpa [#allocation7], 1
    %123 = vsyncpa [#allocation5], 1

</llo_original>
